<compile_context>
chip_gen: v5e
topology: v5e:2x2
jax: 0.10.0
libtpu: 0.0.40
codegen_flags: <defaults>
</compile_context>

<pallas_src>
import functools
import math

import jax
import jax.numpy as jnp
from jax import lax
from jax.experimental import pallas as pl
from jax.experimental.pallas import tpu as pltpu

_INV_SQRT2 = 1.0 / math.sqrt(2.0)
_INV_SQRT_2PI = 1.0 / math.sqrt(2.0 * math.pi)
_VAR_FLOOR = 1e-30  # guards rsqrt(0): keeps relu moments finite when var_f == 0


def _cdiv(a, b):
    return -(-a // b)


def _round_up(x, m):
    return _cdiv(x, m) * m


def _choose_tile(dim, preferred, align):
    """Tile that is a multiple of `align`, near `preferred`, with small padding.

    Never silently takes a huge full-extent block (v7x VMEM safety) and keeps
    lane dims 128-aligned so output stores stay unmasked.
    """
    padded_min = _round_up(dim, align)
    if padded_min <= preferred:
        return padded_min
    n_tiles = _cdiv(dim, preferred)
    return _round_up(_cdiv(dim, n_tiles), align)


def _clt_kernel(*refs, isinput, isoutput):
    if isinput:
        mu_ref, mT_ref, vsT_ref, bias_ref, mean_out_ref, var_out_ref = refs
        var_ref = None
    else:
        mu_ref, var_ref, mT_ref, vsT_ref, bias_ref, mean_out_ref, var_out_ref = refs

    k = pl.program_id(2)

    # Outputs are f32 and resident across the k axis -> accumulate in place.
    @pl.when(k == 0)
    def _init():
        mean_out_ref[...] = jnp.zeros_like(mean_out_ref)
        var_out_ref[...] = jnp.zeros_like(var_out_ref)

    mu_h = mu_ref[...]          # (tm, tk)
    m_t = mT_ref[...]           # (tk, tn)  M^T, pre-transposed in the wrapper
    vs_t = vsT_ref[...]         # (tk, tn)  var_s^T = exp(clamp(logS))^T

    # mu_f partial: mu_h @ M^T
    mean_out_ref[...] += jnp.dot(mu_h, m_t, preferred_element_type=jnp.float32)

    mu_sq = mu_h * mu_h
    if isinput:
        var_out_ref[...] += jnp.dot(mu_sq, vs_t,
                                    preferred_element_type=jnp.float32)
    else:
        var_h = var_ref[...]
        var_out_ref[...] += jnp.dot(var_h + mu_sq, vs_t,
                                    preferred_element_type=jnp.float32)
        # (M^2)^T built per tile on the VPU; hides under the MXU work.
        var_out_ref[...] += jnp.dot(var_h, m_t * m_t,
                                    preferred_element_type=jnp.float32)

    @pl.when(k == pl.num_programs(2) - 1)
    def _finalize():
        mu_f = mean_out_ref[...] + bias_ref[...]     # (1, tn) broadcasts
        if isoutput:
            mean_out_ref[...] = mu_f                 # var_out_ref already = var_f
        else:
            # relu_moments(mu_f, sqrt(var_f)) with a floor so var_f == 0 stays finite.
            var_f = jnp.maximum(var_out_ref[...], _VAR_FLOOR)
            inv_sig = lax.rsqrt(var_f)
            sig = var_f * inv_sig
            alpha = mu_f * inv_sig
            cdf = 0.5 * (1.0 + lax.erf(alpha * _INV_SQRT2))
            pdf = _INV_SQRT_2PI * jnp.exp(-0.5 * alpha * alpha)
            relu_mean = mu_f * cdf + sig * pdf
            relu_var = var_f * cdf + mu_f * relu_mean - relu_mean * relu_mean
            mean_out_ref[...] = relu_mean
            var_out_ref[...] = relu_var


def clt_layer_forward(mu_h, var_h, M, logS, Mbias, *,
                      isinput=False, isoutput=False,
                      compute_dtype=jnp.bfloat16,
                      tile_m=512, tile_n=512, tile_k=512):
    """Pallas implementation of CLTLayer.forward.

    mu_h, var_h: (B, n_in) float32   (var_h ignored / not streamed if isinput)
    M, logS:     (n_out, n_in) float32
    Mbias:       (n_out,) float32
    Returns (mean, var), each (B, n_out) float32.

    compute_dtype=jnp.bfloat16 (default) casts weights + activations to bf16
    for the MXU (f32 accumulation); accepted error vs. the f32 reference is
    ~1e-2 absolute at these scales.  compute_dtype=jnp.float32 reproduces the
    module semantics to <1e-4.
    """
    f32 = jnp.float32
    B, n_in = mu_h.shape
    n_out, n_in_w = M.shape
    assert n_in_w == n_in
    if not isinput:
        assert var_h is not None and var_h.shape == (B, n_in)

    tm = _choose_tile(B, tile_m, 8)        # sublane dim of activations/outputs
    tn = _choose_tile(n_out, tile_n, 128)  # lane dim of weights/outputs
    tk = _choose_tile(n_in, tile_k, 128)   # lane dim of activations
    gm, gn, gk = _cdiv(B, tm), _cdiv(n_out, tn), _cdiv(n_in, tk)
    Bp, n_out_p, n_in_p = gm * tm, gn * tn, gk * tk

    # One-time weight prep (amortized over gm re-streams by the kernel):
    # precompute var_s, transpose to (n_in, n_out), cast to compute_dtype.
    var_s = jnp.exp(jnp.clip(logS.astype(f32), -11.0, 11.0))
    m_t = M.astype(compute_dtype).T
    vs_t = var_s.astype(compute_dtype).T

    def pad2(x, rows, cols):
        return jnp.pad(x, ((0, rows - x.shape[0]), (0, cols - x.shape[1])))

    mu_p = pad2(mu_h.astype(compute_dtype), Bp, n_in_p)
    m_t = pad2(m_t, n_in_p, n_out_p)
    vs_t = pad2(vs_t, n_in_p, n_out_p)
    bias_p = jnp.pad(Mbias.astype(f32), (0, n_out_p - n_out)).reshape(1, n_out_p)

    # Grid = (n_out tiles, batch tiles, k) so a megacore split lands on n_out.
    act_spec = pl.BlockSpec((tm, tk), lambda j, i, k: (i, k))
    w_spec = pl.BlockSpec((tk, tn), lambda j, i, k: (k, j))
    bias_spec = pl.BlockSpec((1, tn), lambda j, i, k: (0, j))
    out_spec = pl.BlockSpec((tm, tn), lambda j, i, k: (i, j))

    operands = [mu_p]
    in_specs = [act_spec]
    if not isinput:
        operands.append(pad2(var_h.astype(compute_dtype), Bp, n_in_p))
        in_specs.append(act_spec)
    operands += [m_t, vs_t, bias_p]
    in_specs += [w_spec, w_spec, bias_spec]

    # VMEM budget: double-buffered inputs + resident f32 outputs.
    isz = jnp.dtype(compute_dtype).itemsize
    n_act = 1 if isinput else 2
    vmem_bytes = 2 * (n_act * tm * tk * isz          # activation streams
                      + 2 * tk * tn * isz            # M^T, var_s^T
                      + tn * 4                       # bias
                      + 2 * tm * tn * 4)             # two f32 output accumulators
    vmem_limit = int(min(64 * 1024 * 1024,
                         max(32 * 1024 * 1024, int(1.5 * vmem_bytes))))

    n_dots = 2 if isinput else 3
    cost = pl.CostEstimate(
        flops=2 * Bp * n_in_p * n_out_p * n_dots,
        transcendentals=0 if isoutput else 2 * Bp * n_out_p,
        bytes_accessed=(gm * 2 * n_in_p * n_out_p * isz     # weights re-streamed per batch tile
                        + gn * n_act * Bp * n_in_p * isz    # activations re-streamed per n_out tile
                        + 2 * Bp * n_out_p * 4              # outputs
                        + gm * n_out_p * 4),                 # bias
    )

    kernel = functools.partial(_clt_kernel, isinput=isinput, isoutput=isoutput)

    mean, var = pl.pallas_call(
        kernel,
        out_shape=(jax.ShapeDtypeStruct((Bp, n_out_p), f32),
                   jax.ShapeDtypeStruct((Bp, n_out_p), f32)),
        grid_spec=pltpu.PrefetchScalarGridSpec(
            num_scalar_prefetch=0,
            grid=(gn, gm, gk),
            in_specs=in_specs,
            out_specs=[out_spec, out_spec],
        ),
        compiler_params=pltpu.CompilerParams(
            dimension_semantics=("parallel", "parallel", "arbitrary"),
            vmem_limit_bytes=vmem_limit),
        cost_estimate=cost,
    )(*operands)

    if Bp != B or n_out_p != n_out:
        mean = mean[:B, :n_out]
        var = var[:B, :n_out]
    return mean, var


def _reference_forward(mu_h, var_h, M, logS, Mbias, *, isinput=False, isoutput=False):
    """Pure-JAX reference mirroring the PyTorch module."""
    hp = lax.Precision.HIGHEST
    var_s = jnp.exp(jnp.clip(logS, -11.0, 11.0))
    mu_f = jnp.dot(mu_h, M.T, precision=hp) + Mbias
    if isinput:
        var_f = jnp.dot(mu_h ** 2, var_s.T, precision=hp)
    else:
        var_f = (jnp.dot(var_h + mu_h ** 2, var_s.T, precision=hp)
                 + jnp.dot(var_h, (M ** 2).T, precision=hp))
    if isoutput:
        return mu_f, var_f
    sig = jnp.sqrt(var_f)
    a = mu_f / sig
    cdf = 0.5 * (1.0 + lax.erf(a / math.sqrt(2.0)))
    pdf = 1.0 / math.sqrt(2.0 * math.pi) * jnp.exp(-0.5 * a * a)
    rmean = mu_f * cdf + sig * pdf
    rvar = (sig ** 2 + mu_f ** 2) * cdf + mu_f * sig * pdf - rmean ** 2
    return rmean, rvar


def _make_params(key, B, n_in, n_out):
    k_mu, k_var, k_M, k_logS = jax.random.split(key, 4)
    stdv = 1.0 / math.sqrt(n_in)
    M = stdv * jax.random.normal(k_M, (n_out, n_in), dtype=jnp.float32)
    logS = -9.0 + 0.001 * jax.random.normal(k_logS, (n_out, n_in), dtype=jnp.float32)
    Mbias = jnp.zeros((n_out,), dtype=jnp.float32)
    mu_h = jax.random.normal(k_mu, (B, n_in), dtype=jnp.float32)
    var_h = jax.nn.softplus(jax.random.normal(k_var, (B, n_in), dtype=jnp.float32))
    return mu_h, var_h, M, logS, Mbias


if __name__ == "__main__":
    key = jax.random.PRNGKey(0)
    k_a, k_b = jax.random.split(key)

    configs = [
        dict(isinput=False, isoutput=False),   # hidden layer (default)
        dict(isinput=True, isoutput=False),    # input layer
        dict(isinput=False, isoutput=True),    # output layer (no ReLU moments)
    ]

    # Small, tile-aligned shapes.
    B, n_in, n_out = 16, 256, 128
    mu_h, var_h, M, logS, Mbias = _make_params(k_a, B, n_in, n_out)

    # 1) Exact-semantics f32 path: tight tolerance vs. HIGHEST-precision reference.
    for cfg in configs:
        mean, var = clt_layer_forward(mu_h, var_h, M, logS, Mbias,
                                      compute_dtype=jnp.float32, **cfg)
        jax.block_until_ready((mean, var))
        rm, rv = _reference_forward(mu_h, var_h, M, logS, Mbias, **cfg)
        assert mean.shape == (B, n_out) and var.shape == (B, n_out)
        assert jnp.allclose(mean, rm, atol=1e-4, rtol=1e-4), f"f32 mean mismatch {cfg}"
        assert jnp.allclose(var, rv, atol=1e-4, rtol=1e-4), f"f32 var mismatch {cfg}"

    # 2) Default bf16 fast path (f32 accumulation): documented ~1e-2 accepted error.
    for cfg in configs:
        mean, var = clt_layer_forward(mu_h, var_h, M, logS, Mbias, **cfg)
        jax.block_until_ready((mean, var))
        rm, rv = _reference_forward(mu_h, var_h, M, logS, Mbias, **cfg)
        assert jnp.allclose(mean, rm, atol=5e-2, rtol=5e-2), f"bf16 mean mismatch {cfg}"
        assert jnp.allclose(var, rv, atol=5e-2, rtol=5e-2), f"bf16 var mismatch {cfg}"

    # 3) Non-tile-aligned shapes exercise the padding / tile-selection path.
    B2, n_in2, n_out2 = 20, 200, 120
    mu2, var2, M2, logS2, Mbias2 = _make_params(k_b, B2, n_in2, n_out2)
    for cfg in configs:
        mean, var = clt_layer_forward(mu2, var2, M2, logS2, Mbias2,
                                      compute_dtype=jnp.float32, **cfg)
        jax.block_until_ready((mean, var))
        rm, rv = _reference_forward(mu2, var2, M2, logS2, Mbias2, **cfg)
        assert mean.shape == (B2, n_out2) and var.shape == (B2, n_out2)
        assert jnp.allclose(mean, rm, atol=1e-4, rtol=1e-4), f"pad mean mismatch {cfg}"
        assert jnp.allclose(var, rv, atol=1e-4, rtol=1e-4), f"pad var mismatch {cfg}"

    print("KERNEL_OK")
</pallas_src>

<mosaic_0001>
module attributes {stable_mosaic.version = 11 : i64} {
  func.func @_clt_kernel(%arg0: i32, %arg1: i32, %arg2: i32, %arg3: memref<16x256xf32, #tpu.memory_space<vmem>>, %arg4: memref<16x256xf32, #tpu.memory_space<vmem>>, %arg5: memref<256x128xf32, #tpu.memory_space<vmem>>, %arg6: memref<256x128xf32, #tpu.memory_space<vmem>>, %arg7: memref<1x128xf32, #tpu.memory_space<vmem>>, %arg8: memref<16x128xf32, #tpu.memory_space<vmem>>, %arg9: memref<16x128xf32, #tpu.memory_space<vmem>>) attributes {dimension_semantics = [#tpu.dimension_semantics<parallel>, #tpu.dimension_semantics<parallel>, #tpu.dimension_semantics<arbitrary>], iteration_bounds = array<i64: 1, 1, 1>, scalar_prefetch = 0 : i64, scratch_operands = 0 : i64, tpu.core_type = #tpu.core_type<tc>, window_params = [{transform_indices = @transform_0, window_bounds = array<i64: 16, 256>}, {transform_indices = @transform_1, window_bounds = array<i64: 16, 256>}, {transform_indices = @transform_2, window_bounds = array<i64: 256, 128>}, {transform_indices = @transform_3, window_bounds = array<i64: 256, 128>}, {transform_indices = @transform_4, window_bounds = array<i64: 1, 128>}, {transform_indices = @transform_5, window_bounds = array<i64: 16, 128>}, {transform_indices = @transform_6, window_bounds = array<i64: 16, 128>}]} {
    %c0_i32 = arith.constant 0 : i32
    %0 = arith.cmpi eq, %arg2, %c0_i32 : i32
    %1 = arith.extui %0 : i1 to i32
    %c0_i32_0 = arith.constant 0 : i32
    %2 = arith.cmpi ne, %1, %c0_i32_0 : i32
    scf.if %2 {
      %cst_24 = arith.constant 0.000000e+00 : f32
      %25 = vector.broadcast %cst_24 : f32 to vector<16x128xf32>
      %c0_25 = arith.constant 0 : index
      %c0_26 = arith.constant 0 : index
      %26 = vector.load %arg8[%c0_25, %c0_26] : memref<16x128xf32, #tpu.memory_space<vmem>>, vector<16x128xf32>
      tpu.vector_store %arg8[%c0_25, %c0_26], %25 {strides = array<i32>} : memref<16x128xf32, #tpu.memory_space<vmem>>, vector<16x128xf32>,
      %cst_27 = arith.constant 0.000000e+00 : f32
      %27 = vector.broadcast %cst_27 : f32 to vector<16x128xf32>
      %c0_28 = arith.constant 0 : index
      %c0_29 = arith.constant 0 : index
      %28 = vector.load %arg9[%c0_28, %c0_29] : memref<16x128xf32, #tpu.memory_space<vmem>>, vector<16x128xf32>
      tpu.vector_store %arg9[%c0_28, %c0_29], %27 {strides = array<i32>} : memref<16x128xf32, #tpu.memory_space<vmem>>, vector<16x128xf32>,
    } else {
    }
    %c0 = arith.constant 0 : index
    %c0_1 = arith.constant 0 : index
    %3 = vector.load %arg3[%c0, %c0_1] : memref<16x256xf32, #tpu.memory_space<vmem>>, vector<16x256xf32>
    %c0_2 = arith.constant 0 : index
    %c0_3 = arith.constant 0 : index
    %4 = vector.load %arg5[%c0_2, %c0_3] : memref<256x128xf32, #tpu.memory_space<vmem>>, vector<256x128xf32>
    %c0_4 = arith.constant 0 : index
    %c0_5 = arith.constant 0 : index
    %5 = vector.load %arg6[%c0_4, %c0_5] : memref<256x128xf32, #tpu.memory_space<vmem>>, vector<256x128xf32>
    %c0_6 = arith.constant 0 : index
    %c0_7 = arith.constant 0 : index
    %6 = vector.load %arg8[%c0_6, %c0_7] : memref<16x128xf32, #tpu.memory_space<vmem>>, vector<16x128xf32>
    %cst = arith.constant dense<0.000000e+00> : vector<16x128xf32>
    %7 = tpu.matmul %3, %4, %cst {dimension_numbers = #tpu.dot_dimension_numbers<[1], [0], [0], [1], [0, 0, 1, 1], [], []>} : vector<16x256xf32>, vector<256x128xf32>, vector<16x128xf32> -> vector<16x128xf32>
    %8 = arith.addf %6, %7 : vector<16x128xf32>
    %c0_8 = arith.constant 0 : index
    %c0_9 = arith.constant 0 : index
    %9 = vector.load %arg8[%c0_8, %c0_9] : memref<16x128xf32, #tpu.memory_space<vmem>>, vector<16x128xf32>
    tpu.vector_store %arg8[%c0_8, %c0_9], %8 {strides = array<i32>} : memref<16x128xf32, #tpu.memory_space<vmem>>, vector<16x128xf32>,
    %10 = arith.mulf %3, %3 : vector<16x256xf32>
    %c0_10 = arith.constant 0 : index
    %c0_11 = arith.constant 0 : index
    %11 = vector.load %arg4[%c0_10, %c0_11] : memref<16x256xf32, #tpu.memory_space<vmem>>, vector<16x256xf32>
    %c0_12 = arith.constant 0 : index
    %c0_13 = arith.constant 0 : index
    %12 = vector.load %arg9[%c0_12, %c0_13] : memref<16x128xf32, #tpu.memory_space<vmem>>, vector<16x128xf32>
    %13 = arith.addf %11, %10 : vector<16x256xf32>
    %cst_14 = arith.constant dense<0.000000e+00> : vector<16x128xf32>
    %14 = tpu.matmul %13, %5, %cst_14 {dimension_numbers = #tpu.dot_dimension_numbers<[1], [0], [0], [1], [0, 0, 1, 1], [], []>} : vector<16x256xf32>, vector<256x128xf32>, vector<16x128xf32> -> vector<16x128xf32>
    %15 = arith.addf %12, %14 : vector<16x128xf32>
    %c0_15 = arith.constant 0 : index
    %c0_16 = arith.constant 0 : index
    %16 = vector.load %arg9[%c0_15, %c0_16] : memref<16x128xf32, #tpu.memory_space<vmem>>, vector<16x128xf32>
    tpu.vector_store %arg9[%c0_15, %c0_16], %15 {strides = array<i32>} : memref<16x128xf32, #tpu.memory_space<vmem>>, vector<16x128xf32>,
    %c0_17 = arith.constant 0 : index
    %c0_18 = arith.constant 0 : index
    %17 = vector.load %arg9[%c0_17, %c0_18] : memref<16x128xf32, #tpu.memory_space<vmem>>, vector<16x128xf32>
    %18 = arith.mulf %4, %4 : vector<256x128xf32>
    %cst_19 = arith.constant dense<0.000000e+00> : vector<16x128xf32>
    %19 = tpu.matmul %11, %18, %cst_19 {dimension_numbers = #tpu.dot_dimension_numbers<[1], [0], [0], [1], [0, 0, 1, 1], [], []>} : vector<16x256xf32>, vector<256x128xf32>, vector<16x128xf32> -> vector<16x128xf32>
    %20 = arith.addf %17, %19 : vector<16x128xf32>
    %c0_20 = arith.constant 0 : index
    %c0_21 = arith.constant 0 : index
    %21 = vector.load %arg9[%c0_20, %c0_21] : memref<16x128xf32, #tpu.memory_space<vmem>>, vector<16x128xf32>
    tpu.vector_store %arg9[%c0_20, %c0_21], %20 {strides = array<i32>} : memref<16x128xf32, #tpu.memory_space<vmem>>, vector<16x128xf32>,
    %c0_i32_22 = arith.constant 0 : i32
    %22 = arith.cmpi eq, %arg2, %c0_i32_22 : i32
    %23 = arith.extui %22 : i1 to i32
    %c0_i32_23 = arith.constant 0 : i32
    %24 = arith.cmpi ne, %23, %c0_i32_23 : i32
    scf.if %24 {
      %c0_24 = arith.constant 0 : index
      %c0_25 = arith.constant 0 : index
      %25 = vector.load %arg8[%c0_24, %c0_25] : memref<16x128xf32, #tpu.memory_space<vmem>>, vector<16x128xf32>
      %c0_26 = arith.constant 0 : index
      %c0_27 = arith.constant 0 : index
      %26 = vector.load %arg7[%c0_26, %c0_27] : memref<1x128xf32, #tpu.memory_space<vmem>>, vector<1x128xf32>
      %27 = vector.broadcast %26 : vector<1x128xf32> to vector<16x128xf32>
      %28 = arith.addf %25, %27 : vector<16x128xf32>
      %c0_28 = arith.constant 0 : index
      %c0_29 = arith.constant 0 : index
      %29 = vector.load %arg9[%c0_28, %c0_29] : memref<16x128xf32, #tpu.memory_space<vmem>>, vector<16x128xf32>
      %cst_30 = arith.constant 1.000000e-30 : f32
      %30 = vector.broadcast %cst_30 : f32 to vector<16x128xf32>
      %31 = arith.maximumf %29, %30 : vector<16x128xf32>
      %32 = math.rsqrt %31 : vector<16x128xf32>
      %33 = arith.mulf %31, %32 : vector<16x128xf32>
      %34 = arith.mulf %28, %32 : vector<16x128xf32>
      %cst_31 = arith.constant 0.707106769 : f32
      %35 = vector.broadcast %cst_31 : f32 to vector<16x128xf32>
      %36 = arith.mulf %34, %35 : vector<16x128xf32>
      %37 = math.erf %36 : vector<16x128xf32>
      %cst_32 = arith.constant 1.000000e+00 : f32
      %38 = vector.broadcast %cst_32 : f32 to vector<16x128xf32>
      %39 = arith.addf %38, %37 : vector<16x128xf32>
      %cst_33 = arith.constant 5.000000e-01 : f32
      %40 = vector.broadcast %cst_33 : f32 to vector<16x128xf32>
      %41 = arith.mulf %40, %39 : vector<16x128xf32>
      %cst_34 = arith.constant -5.000000e-01 : f32
      %42 = vector.broadcast %cst_34 : f32 to vector<16x128xf32>
      %43 = arith.mulf %42, %34 : vector<16x128xf32>
      %44 = arith.mulf %43, %34 : vector<16x128xf32>
      %45 = math.exp %44 : vector<16x128xf32>
      %cst_35 = arith.constant 0.398942292 : f32
      %46 = vector.broadcast %cst_35 : f32 to vector<16x128xf32>
      %47 = arith.mulf %46, %45 : vector<16x128xf32>
      %48 = arith.mulf %28, %41 : vector<16x128xf32>
      %49 = arith.mulf %33, %47 : vector<16x128xf32>
      %50 = arith.addf %48, %49 : vector<16x128xf32>
      %51 = arith.mulf %31, %41 : vector<16x128xf32>
      %52 = arith.mulf %28, %50 : vector<16x128xf32>
      %53 = arith.addf %51, %52 : vector<16x128xf32>
      %54 = arith.mulf %50, %50 : vector<16x128xf32>
      %55 = arith.subf %53, %54 : vector<16x128xf32>
      %c0_36 = arith.constant 0 : index
      %c0_37 = arith.constant 0 : index
      %56 = vector.load %arg8[%c0_36, %c0_37] : memref<16x128xf32, #tpu.memory_space<vmem>>, vector<16x128xf32>
      tpu.vector_store %arg8[%c0_36, %c0_37], %50 {strides = array<i32>} : memref<16x128xf32, #tpu.memory_space<vmem>>, vector<16x128xf32>,
      %c0_38 = arith.constant 0 : index
      %c0_39 = arith.constant 0 : index
      %57 = vector.load %arg9[%c0_38, %c0_39] : memref<16x128xf32, #tpu.memory_space<vmem>>, vector<16x128xf32>
      tpu.vector_store %arg9[%c0_38, %c0_39], %55 {strides = array<i32>} : memref<16x128xf32, #tpu.memory_space<vmem>>, vector<16x128xf32>,
    } else {
    }
    return
  }
  func.func @transform_0(%arg0: i32, %arg1: i32, %arg2: i32) -> (i32, i32) {
    %c0_i32 = arith.constant 0 : i32
    return %arg1, %arg2 : i32, i32
  }
  func.func @transform_1(%arg0: i32, %arg1: i32, %arg2: i32) -> (i32, i32) {
    %c0_i32 = arith.constant 0 : i32
    return %arg1, %arg2 : i32, i32
  }
  func.func @transform_2(%arg0: i32, %arg1: i32, %arg2: i32) -> (i32, i32) {
    %c0_i32 = arith.constant 0 : i32
    return %arg2, %arg0 : i32, i32
  }
  func.func @transform_3(%arg0: i32, %arg1: i32, %arg2: i32) -> (i32, i32) {
    %c0_i32 = arith.constant 0 : i32
    return %arg2, %arg0 : i32, i32
  }
  func.func @transform_4(%arg0: i32, %arg1: i32, %arg2: i32) -> (i32, i32) {
    %c0_i32 = arith.constant 0 : i32
    %c0_i32_0 = arith.constant 0 : i32
    return %c0_i32, %arg0 : i32, i32
  }
  func.func @transform_5(%arg0: i32, %arg1: i32, %arg2: i32) -> (i32, i32) {
    %c0_i32 = arith.constant 0 : i32
    return %arg1, %arg0 : i32, i32
  }
  func.func @transform_6(%arg0: i32, %arg1: i32, %arg2: i32) -> (i32, i32) {
    %c0_i32 = arith.constant 0 : i32
    return %arg1, %arg0 : i32, i32
  }
}

</mosaic_0001>

<llo_original>
// kernel: tpu_custom_call.1
$region0: #{tpu_custom_call.1}
  #allocation0 [shape = 'u32[]', space=smem, size = 0x4, offset = 0x4, fixed_abs, tag = 'smem constant byte address 0x4 - core index']
  #allocation1 [shape = 'u32[72,128]{1,0:T(1,128)}', space=vmem, size = 0x9000, scoped, tag = 'internal scratch']
  %s0 = inlined_call_operand.hbm [shape: f32[16,256], index: 0, kind: input, shape index: {}]
  %s1 = inlined_call_operand.hbm [shape: f32[16,256], index: 1, kind: input, shape index: {}]
  %s2 = inlined_call_operand.hbm [shape: f32[256,128], index: 2, kind: input, shape index: {}]
  %s3 = inlined_call_operand.hbm [shape: f32[256,128], index: 3, kind: input, shape index: {}]
  %s4 = inlined_call_operand.vmem [shape: f32[1,128], index: 4, kind: input, shape index: {}]
  %s5 = inlined_call_operand.hbm [shape: f32[16,128], index: 5, kind: output, shape index: {0}]
  %s6 = inlined_call_operand.hbm [shape: f32[16,128], index: 6, kind: output, shape index: {1}]
  %7 = xla_tuple %s5, %s6
  %s8 = sld [smem:[#allocation0]]
  $region62: #{tpu_custom_call.1} parent=0
    _
  %s10 = ssub.s32 1, %s8
  %s11 = scalar_select 0, %s10, %s8
  $region1: #{tpu_custom_call.1} parent=0
    #allocation2 [shape = 'u8[16384]{0}', space=vmem, size = 0x4000, scoped, tag = 'input window, operand 0, single buffered']
    #allocation3 [shape = 's32[1]{0}', space=sflag, size = 0x4, scoped, tag = 'scoped memory for tpu_custom_call.1']
    #allocation4 [shape = 's32[1]{0}', space=sflag, size = 0x4, scoped, tag = 'scoped memory for tpu_custom_call.1']
    #allocation5 [shape = 'u8[16384]{0}', space=vmem, size = 0x4000, scoped, tag = 'input window, operand 1, single buffered']
    #allocation6 [shape = 's32[1]{0}', space=sflag, size = 0x4, scoped, tag = 'scoped memory for tpu_custom_call.1']
    #allocation7 [shape = 'u8[131072]{0}', space=vmem, size = 0x20000, scoped, tag = 'input window, operand 2, single buffered']
    #allocation8 [shape = 'u8[131072]{0}', space=vmem, size = 0x20000, scoped, tag = 'input window, operand 3, single buffered']
    #allocation9 [shape = 's32[1]{0}', space=sflag, size = 0x4, scoped, tag = 'scoped memory for tpu_custom_call.1']
    #allocation10 [shape = 'u8[8192]{0}', space=vmem, size = 0x2000, scoped, tag = 'output window, operand 0, single buffered']
    #allocation11 [shape = 'u8[8192]{0}', space=vmem, size = 0x2000, scoped, tag = 'output window, operand 1, single buffered']
    #allocation12 [shape = 's32[1]{0}', space=sflag, size = 0x4, scoped, tag = 'scoped memory for tpu_custom_call.1']
    %12 = vsyncpa [#allocation3], 0
    %13 = vsyncpa [#allocation6], 0
    %14 = vsyncpa [#allocation9], 0
    %15 = vsyncpa [#allocation4], 0
    %16 = vsyncpa [#allocation12], 0
    // Predicated region
    $region2: #{tpu_custom_call.1} parent=1 // pred_check
      _
    $region3: #{tpu_custom_call.1} parent=1 // pred_check_branch
      %18 = sbr.rel (0) target = $region5
    $region4: #{tpu_custom_call.1} parent=1 // pred_region
      %20 = vsyncadd [#allocation3], 0
      %s21 = sshll.u32 %s0, 4
      %s22 = int_to_ptr.hbm [resolvable:$true] %s21
      %s23 = sshll.u32 [#allocation2], 4
      %s24 = int_to_ptr.vmem [resolvable:$true] %s23
      %29 = dma.hbm_to_vmem [thread:$0]  %s22, 512, %s24, [#allocation3], 256, 256, 16
    $region5: #{tpu_custom_call.1} parent=1 // pred_fallthru
      _
    // Predicated region
    $region6: #{tpu_custom_call.1} parent=1 // pred_check
      _
    $region7: #{tpu_custom_call.1} parent=1 // pred_check_branch
      %31 = sbr.rel (0) target = $region9
    $region8: #{tpu_custom_call.1} parent=1 // pred_region
      %33 = vsyncadd [#allocation6], 0
      %s34 = sshll.u32 %s1, 4
      %s35 = int_to_ptr.hbm [resolvable:$true] %s34
      %s36 = sshll.u32 [#allocation5], 4
      %s37 = int_to_ptr.vmem [resolvable:$true] %s36
      %42 = dma.hbm_to_vmem [thread:$0]  %s35, 512, %s37, [#allocation6], 256, 256, 16
    $region9: #{tpu_custom_call.1} parent=1 // pred_fallthru
      _
    // Predicated region
    $region10: #{tpu_custom_call.1} parent=1 // pred_check
      _
    $region11: #{tpu_custom_call.1} parent=1 // pred_check_branch
      %44 = sbr.rel (0) target = $region13
    $region12: #{tpu_custom_call.1} parent=1 // pred_region
      %46 = vsyncadd [#allocation6], 0
      %s47 = sshll.u32 %s2, 4
      %s48 = int_to_ptr.hbm [resolvable:$true] %s47
      %s49 = sshll.u32 [#allocation7], 4
      %s50 = int_to_ptr.vmem [resolvable:$true] %s49
      %55 = dma.hbm_to_vmem [thread:$0]  %s48, 4096, %s50, [#allocation6], 128, 128, 8
    $region13: #{tpu_custom_call.1} parent=1 // pred_fallthru
      _
    // Predicated region
    $region14: #{tpu_custom_call.1} parent=1 // pred_check
      _
    $region15: #{tpu_custom_call.1} parent=1 // pred_check_branch
      %57 = sbr.rel (0) target = $region17
    $region16: #{tpu_custom_call.1} parent=1 // pred_region
      %59 = vsyncadd [#allocation9], 0
      %s60 = sshll.u32 %s3, 4
      %s61 = int_to_ptr.hbm [resolvable:$true] %s60
      %s62 = sshll.u32 [#allocation8], 4
      %s63 = int_to_ptr.vmem [resolvable:$true] %s62
      %68 = dma.hbm_to_vmem [thread:$0]  %s61, 4096, %s63, [#allocation9], 128, 128, 8
    $region17: #{tpu_custom_call.1} parent=1 // pred_fallthru
      _
    // Predicated region
    $region18: #{tpu_custom_call.1} parent=1 // pred_check
      _
    $region19: #{tpu_custom_call.1} parent=1 // pred_check_branch
      %70 = sbr.rel (0) target = $region21
    $region20: #{tpu_custom_call.1} parent=1 // pred_region
      _
    $region21: #{tpu_custom_call.1} parent=1 // pred_fallthru
      _
    // Predicated region
    $region22: #{tpu_custom_call.1} parent=1 // pred_check
      _
    $region23: #{tpu_custom_call.1} parent=1 // pred_check_branch
      %72 = sbr.rel (0) target = $region25
    $region24: #{tpu_custom_call.1} parent=1 // pred_region
      %74 = dma.done [#allocation3], 512
    $region25: #{tpu_custom_call.1} parent=1 // pred_fallthru
      _
    // Predicated region
    $region26: #{tpu_custom_call.1} parent=1 // pred_check
      _
    $region27: #{tpu_custom_call.1} parent=1 // pred_check_branch
      %76 = sbr.rel (0) target = $region29
    $region28: #{tpu_custom_call.1} parent=1 // pred_region
      %78 = dma.done [#allocation6], 512
    $region29: #{tpu_custom_call.1} parent=1 // pred_fallthru
      _
    // Predicated region
    $region30: #{tpu_custom_call.1} parent=1 // pred_check
      _
    $region31: #{tpu_custom_call.1} parent=1 // pred_check_branch
      %80 = sbr.rel (0) target = $region33
    $region32: #{tpu_custom_call.1} parent=1 // pred_region
      %82 = dma.done [#allocation6], 4096
    $region33: #{tpu_custom_call.1} parent=1 // pred_fallthru
      _
    // Predicated region
    $region34: #{tpu_custom_call.1} parent=1 // pred_check
      _
    $region35: #{tpu_custom_call.1} parent=1 // pred_check_branch
      %84 = sbr.rel (0) target = $region37
    $region36: #{tpu_custom_call.1} parent=1 // pred_region
      %86 = dma.done [#allocation9], 4096
    $region37: #{tpu_custom_call.1} parent=1 // pred_fallthru
      _
    %p87 = scmp.eq.s32.totalorder 0, 0
    // Predicated region
    $region38: #{tpu_custom_call.1} parent=1 // pred_check
      %p88 = pneg %p87
    $region39: #{tpu_custom_call.1} parent=1 // pred_check_branch
      %90 = sbr.rel (%p88) target = $region41
    $region40: #{tpu_custom_call.1} parent=1 // pred_region
      %91 = vst [vmem:[#allocation10] sm:$0xff] 0.0
      %92 = vst [vmem:[#allocation10 + $0x8] sm:$0xff] 0.0
      %93 = vst [vmem:[#allocation11] sm:$0xff] 0.0
      %94 = vst [vmem:[#allocation11 + $0x8] sm:$0xff] 0.0
    $region41: #{tpu_custom_call.1} parent=1 // pred_fallthru
      _
    %v95 = vld [vmem:[#allocation2] sm:$0xff]
    %v96 = vld [vmem:[#allocation2 + $0x8] sm:$0xff]
    %v97 = vld [vmem:[#allocation2 + $0x10] sm:$0xff]
    %v98 = vld [vmem:[#allocation2 + $0x18] sm:$0xff]
    %v99 = vld [vmem:[#allocation7] sm:$0xff]
    %v100 = vld [vmem:[#allocation7 + $0x8] sm:$0xff]
    %v101 = vld [vmem:[#allocation7 + $0x10] sm:$0xff]
    %v102 = vld [vmem:[#allocation7 + $0x18] sm:$0xff]
    %v103 = vld [vmem:[#allocation7 + $0x20] sm:$0xff]
    %v104 = vld [vmem:[#allocation7 + $0x28] sm:$0xff]
    %v105 = vld [vmem:[#allocation7 + $0x30] sm:$0xff]
    %v106 = vld [vmem:[#allocation7 + $0x38] sm:$0xff]
    %v107 = vld [vmem:[#allocation7 + $0x40] sm:$0xff]
    %v108 = vld [vmem:[#allocation7 + $0x48] sm:$0xff]
    %v109 = vld [vmem:[#allocation7 + $0x50] sm:$0xff]
    %v110 = vld [vmem:[#allocation7 + $0x58] sm:$0xff]
    %v111 = vld [vmem:[#allocation7 + $0x60] sm:$0xff]
    %v112 = vld [vmem:[#allocation7 + $0x68] sm:$0xff]
    %v113 = vld [vmem:[#allocation7 + $0x70] sm:$0xff]
    %v114 = vld [vmem:[#allocation7 + $0x78] sm:$0xff]
    %v115 = vld [vmem:[#allocation7 + $0x80] sm:$0xff]
    %v116 = vld [vmem:[#allocation7 + $0x88] sm:$0xff]
    %v117 = vld [vmem:[#allocation7 + $0x90] sm:$0xff]
    %v118 = vld [vmem:[#allocation7 + $0x98] sm:$0xff]
    %v119 = vld [vmem:[#allocation7 + $0xa0] sm:$0xff]
    %v120 = vld [vmem:[#allocation7 + $0xa8] sm:$0xff]
    %v121 = vld [vmem:[#allocation7 + $0xb0] sm:$0xff]
    %v122 = vld [vmem:[#allocation7 + $0xb8] sm:$0xff]
    %v123 = vld [vmem:[#allocation7 + $0xc0] sm:$0xff]
    %v124 = vld [vmem:[#allocation7 + $0xc8] sm:$0xff]
    %v125 = vld [vmem:[#allocation7 + $0xd0] sm:$0xff]
    %v126 = vld [vmem:[#allocation7 + $0xd8] sm:$0xff]
    %v127 = vld [vmem:[#allocation7 + $0xe0] sm:$0xff]
    %v128 = vld [vmem:[#allocation7 + $0xe8] sm:$0xff]
    %v129 = vld [vmem:[#allocation7 + $0xf0] sm:$0xff]
    %v130 = vld [vmem:[#allocation7 + $0xf8] sm:$0xff]
    %v131 = vld [vmem:[#allocation8] sm:$0xff]
    %v132 = vld [vmem:[#allocation8 + $0x8] sm:$0xff]
    %v133 = vld [vmem:[#allocation8 + $0x10] sm:$0xff]
    %v134 = vld [vmem:[#allocation8 + $0x18] sm:$0xff]
    %v135 = vld [vmem:[#allocation8 + $0x20] sm:$0xff]
    %v136 = vld [vmem:[#allocation8 + $0x28] sm:$0xff]
    %v137 = vld [vmem:[#allocation8 + $0x30] sm:$0xff]
    %v138 = vld [vmem:[#allocation8 + $0x38] sm:$0xff]
    %v139 = vld [vmem:[#allocation8 + $0x40] sm:$0xff]
    %v140 = vld [vmem:[#allocation8 + $0x48] sm:$0xff]
    %v141 = vld [vmem:[#allocation8 + $0x50] sm:$0xff]
    %v142 = vld [vmem:[#allocation8 + $0x58] sm:$0xff]
    %v143 = vld [vmem:[#allocation8 + $0x60] sm:$0xff]
    %v144 = vld [vmem:[#allocation8 + $0x68] sm:$0xff]
    %v145 = vld [vmem:[#allocation8 + $0x70] sm:$0xff]
    %v146 = vld [vmem:[#allocation8 + $0x78] sm:$0xff]
    %v147 = vld [vmem:[#allocation8 + $0x80] sm:$0xff]
    %v148 = vld [vmem:[#allocation8 + $0x88] sm:$0xff]
    %v149 = vld [vmem:[#allocation8 + $0x90] sm:$0xff]
    %v150 = vld [vmem:[#allocation8 + $0x98] sm:$0xff]
    %v151 = vld [vmem:[#allocation8 + $0xa0] sm:$0xff]
    %v152 = vld [vmem:[#allocation8 + $0xa8] sm:$0xff]
    %v153 = vld [vmem:[#allocation8 + $0xb0] sm:$0xff]
    %v154 = vld [vmem:[#allocation8 + $0xb8] sm:$0xff]
    %v155 = vld [vmem:[#allocation8 + $0xc0] sm:$0xff]
    %v156 = vld [vmem:[#allocation8 + $0xc8] sm:$0xff]
    %v157 = vld [vmem:[#allocation8 + $0xd0] sm:$0xff]
    %v158 = vld [vmem:[#allocation8 + $0xd8] sm:$0xff]
    %v159 = vld [vmem:[#allocation8 + $0xe0] sm:$0xff]
    %v160 = vld [vmem:[#allocation8 + $0xe8] sm:$0xff]
    %v161 = vld [vmem:[#allocation8 + $0xf0] sm:$0xff]
    %v162 = vld [vmem:[#allocation8 + $0xf8] sm:$0xff]
    %v163 = vld [vmem:[#allocation10] sm:$0xff]
    %v164 = vld [vmem:[#allocation10 + $0x8] sm:$0xff]
    %165 = vmatpush.msra.mxu0 %v114
    %166 = vmatpush.msra.mxu0 %v113
    %167 = vmatpush.msra.mxu0 %v112
    %168 = vmatpush.msra.mxu0 %v111
    %169 = vmatpush.msra.mxu0 %v110
    %170 = vmatpush.msra.mxu0 %v109
    %171 = vmatpush.msra.mxu0 %v108
    %172 = vmatpush.msra.mxu0 %v107
    %173 = vmatpush.msra.mxu0 %v106
    %174 = vmatpush.msra.mxu0 %v105
    %175 = vmatpush.msra.mxu0 %v104
    %176 = vmatpush.msra.mxu0 %v103
    %177 = vmatpush.msra.mxu0 %v102
    %178 = vmatpush.msra.mxu0 %v101
    %179 = vmatpush.msra.mxu0 %v100
    %180 = vmatpush.msra.mxu0 %v99
    %181 = vmatmul.f32.gmra.mxu0 %v95
    %v182 = vpop.f32.mrf.mxu0
    %v183 = vadd.f32 0.0, %v182
    %184 = vmatmul.f32.gmra.mxu0 %v97
    %v185 = vpop.f32.mrf.mxu0
    %v186 = vadd.f32 0.0, %v185
    %187 = vdwg.mxu0
    %188 = vmatpush.msra.mxu0 %v130
    %189 = vmatpush.msra.mxu0 %v129
    %190 = vmatpush.msra.mxu0 %v128
    %191 = vmatpush.msra.mxu0 %v127
    %192 = vmatpush.msra.mxu0 %v126
    %193 = vmatpush.msra.mxu0 %v125
    %194 = vmatpush.msra.mxu0 %v124
    %195 = vmatpush.msra.mxu0 %v123
    %196 = vmatpush.msra.mxu0 %v122
    %197 = vmatpush.msra.mxu0 %v121
    %198 = vmatpush.msra.mxu0 %v120
    %199 = vmatpush.msra.mxu0 %v119
    %200 = vmatpush.msra.mxu0 %v118
    %201 = vmatpush.msra.mxu0 %v117
    %202 = vmatpush.msra.mxu0 %v116
    %203 = vmatpush.msra.mxu0 %v115
    %204 = vmatmul.f32.gmra.mxu0 %v96
    %v205 = vpop.f32.mrf.mxu0
    %v206 = vadd.f32 %v183, %v205
    %207 = vmatmul.f32.gmra.mxu0 %v98
    %v208 = vpop.f32.mrf.mxu0
    %v209 = vadd.f32 %v186, %v208
    %210 = vdwg.mxu0
    %v211 = vadd.f32 %v163, %v206
    %v212 = vadd.f32 %v164, %v209
    %213 = vst [vmem:[#allocation10] sm:$0xff] %v211
    %214 = vst [vmem:[#allocation10 + $0x8] sm:$0xff] %v212
    %v215 = vmul.f32 %v95, %v95
    %v216 = vmul.f32 %v96, %v96
    %v217 = vmul.f32 %v97, %v97
    %v218 = vmul.f32 %v98, %v98
    %v219 = vld [vmem:[#allocation5] sm:$0xff]
    %v220 = vld [vmem:[#allocation5 + $0x8] sm:$0xff]
    %v221 = vld [vmem:[#allocation5 + $0x10] sm:$0xff]
    %v222 = vld [vmem:[#allocation5 + $0x18] sm:$0xff]
    %v223 = vld [vmem:[#allocation11] sm:$0xff]
    %v224 = vld [vmem:[#allocation11 + $0x8] sm:$0xff]
    %v225 = vadd.f32 %v219, %v215
    %v226 = vadd.f32 %v220, %v216
    %v227 = vadd.f32 %v221, %v217
    %v228 = vadd.f32 %v222, %v218
    %229 = vmatpush.msra.mxu0 %v146
    %230 = vmatpush.msra.mxu0 %v145
    %231 = vmatpush.msra.mxu0 %v144
    %232 = vmatpush.msra.mxu0 %v143
    %233 = vmatpush.msra.mxu0 %v142
    %234 = vmatpush.msra.mxu0 %v141
    %235 = vmatpush.msra.mxu0 %v140
    %236 = vmatpush.msra.mxu0 %v139
    %237 = vmatpush.msra.mxu0 %v138
    %238 = vmatpush.msra.mxu0 %v137
    %239 = vmatpush.msra.mxu0 %v136
    %240 = vmatpush.msra.mxu0 %v135
    %241 = vmatpush.msra.mxu0 %v134
    %242 = vmatpush.msra.mxu0 %v133
    %243 = vmatpush.msra.mxu0 %v132
    %244 = vmatpush.msra.mxu0 %v131
    %245 = vmatmul.f32.gmra.mxu0 %v225
    %v246 = vpop.f32.mrf.mxu0
    %v247 = vadd.f32 0.0, %v246
    %248 = vmatmul.f32.gmra.mxu0 %v227
    %v249 = vpop.f32.mrf.mxu0
    %v250 = vadd.f32 0.0, %v249
    %251 = vdwg.mxu0
    %252 = vmatpush.msra.mxu0 %v162
    %253 = vmatpush.msra.mxu0 %v161
    %254 = vmatpush.msra.mxu0 %v160
    %255 = vmatpush.msra.mxu0 %v159
    %256 = vmatpush.msra.mxu0 %v158
    %257 = vmatpush.msra.mxu0 %v157
    %258 = vmatpush.msra.mxu0 %v156
    %259 = vmatpush.msra.mxu0 %v155
    %260 = vmatpush.msra.mxu0 %v154
    %261 = vmatpush.msra.mxu0 %v153
    %262 = vmatpush.msra.mxu0 %v152
    %263 = vmatpush.msra.mxu0 %v151
    %264 = vmatpush.msra.mxu0 %v150
    %265 = vmatpush.msra.mxu0 %v149
    %266 = vmatpush.msra.mxu0 %v148
    %267 = vmatpush.msra.mxu0 %v147
    %268 = vmatmul.f32.gmra.mxu0 %v226
    %v269 = vpop.f32.mrf.mxu0
    %v270 = vadd.f32 %v247, %v269
    %271 = vmatmul.f32.gmra.mxu0 %v228
    %v272 = vpop.f32.mrf.mxu0
    %v273 = vadd.f32 %v250, %v272
    %274 = vdwg.mxu0
    %v275 = vadd.f32 %v223, %v270
    %v276 = vadd.f32 %v224, %v273
    %277 = vst [vmem:[#allocation11] sm:$0xff] %v275
    %278 = vst [vmem:[#allocation11 + $0x8] sm:$0xff] %v276
    %v279 = vld [vmem:[#allocation11] sm:$0xff]
    %v280 = vld [vmem:[#allocation11 + $0x8] sm:$0xff]
    %v281 = vmul.f32 %v99, %v99
    %v282 = vmul.f32 %v100, %v100
    %v283 = vmul.f32 %v101, %v101
    %v284 = vmul.f32 %v102, %v102
    %v285 = vmul.f32 %v103, %v103
    %v286 = vmul.f32 %v104, %v104
    %v287 = vmul.f32 %v105, %v105
    %v288 = vmul.f32 %v106, %v106
    %v289 = vmul.f32 %v107, %v107
    %v290 = vmul.f32 %v108, %v108
    %v291 = vmul.f32 %v109, %v109
    %v292 = vmul.f32 %v110, %v110
    %v293 = vmul.f32 %v111, %v111
    %v294 = vmul.f32 %v112, %v112
    %v295 = vmul.f32 %v113, %v113
    %v296 = vmul.f32 %v114, %v114
    %v297 = vmul.f32 %v115, %v115
    %v298 = vmul.f32 %v116, %v116
    %v299 = vmul.f32 %v117, %v117
    %v300 = vmul.f32 %v118, %v118
    %v301 = vmul.f32 %v119, %v119
    %v302 = vmul.f32 %v120, %v120
    %v303 = vmul.f32 %v121, %v121
    %v304 = vmul.f32 %v122, %v122
    %v305 = vmul.f32 %v123, %v123
    %v306 = vmul.f32 %v124, %v124
    %v307 = vmul.f32 %v125, %v125
    %v308 = vmul.f32 %v126, %v126
    %v309 = vmul.f32 %v127, %v127
    %v310 = vmul.f32 %v128, %v128
    %v311 = vmul.f32 %v129, %v129
    %v312 = vmul.f32 %v130, %v130
    %313 = vmatpush.msra.mxu0 %v296
    %314 = vmatpush.msra.mxu0 %v295
    %315 = vmatpush.msra.mxu0 %v294
    %316 = vmatpush.msra.mxu0 %v293
    %317 = vmatpush.msra.mxu0 %v292
    %318 = vmatpush.msra.mxu0 %v291
    %319 = vmatpush.msra.mxu0 %v290
    %320 = vmatpush.msra.mxu0 %v289
    %321 = vmatpush.msra.mxu0 %v288
    %322 = vmatpush.msra.mxu0 %v287
    %323 = vmatpush.msra.mxu0 %v286
    %324 = vmatpush.msra.mxu0 %v285
    %325 = vmatpush.msra.mxu0 %v284
    %326 = vmatpush.msra.mxu0 %v283
    %327 = vmatpush.msra.mxu0 %v282
    %328 = vmatpush.msra.mxu0 %v281
    %329 = vmatmul.f32.gmra.mxu0 %v219
    %v330 = vpop.f32.mrf.mxu0
    %v331 = vadd.f32 0.0, %v330
    %332 = vmatmul.f32.gmra.mxu0 %v221
    %v333 = vpop.f32.mrf.mxu0
    %v334 = vadd.f32 0.0, %v333
    %335 = vdwg.mxu0
    %336 = vmatpush.msra.mxu0 %v312
    %337 = vmatpush.msra.mxu0 %v311
    %338 = vmatpush.msra.mxu0 %v310
    %339 = vmatpush.msra.mxu0 %v309
    %340 = vmatpush.msra.mxu0 %v308
    %341 = vmatpush.msra.mxu0 %v307
    %342 = vmatpush.msra.mxu0 %v306
    %343 = vmatpush.msra.mxu0 %v305
    %344 = vmatpush.msra.mxu0 %v304
    %345 = vmatpush.msra.mxu0 %v303
    %346 = vmatpush.msra.mxu0 %v302
    %347 = vmatpush.msra.mxu0 %v301
    %348 = vmatpush.msra.mxu0 %v300
    %349 = vmatpush.msra.mxu0 %v299
    %350 = vmatpush.msra.mxu0 %v298
    %351 = vmatpush.msra.mxu0 %v297
    %352 = vmatmul.f32.gmra.mxu0 %v220
    %v353 = vpop.f32.mrf.mxu0
    %v354 = vadd.f32 %v331, %v353
    %355 = vmatmul.f32.gmra.mxu0 %v222
    %v356 = vpop.f32.mrf.mxu0
    %v357 = vadd.f32 %v334, %v356
    %358 = vdwg.mxu0
    %v359 = vadd.f32 %v279, %v354
    %v360 = vadd.f32 %v280, %v357
    %361 = vst [vmem:[#allocation11] sm:$0xff] %v359
    %362 = vst [vmem:[#allocation11 + $0x8] sm:$0xff] %v360
    // Predicated region
    $region42: #{tpu_custom_call.1} parent=1 // pred_check
      %p363 = pneg %p87
    $region43: #{tpu_custom_call.1} parent=1 // pred_check_branch
      %365 = sbr.rel (%p363) target = $region45
    $region44: #{tpu_custom_call.1} parent=1 // pred_region
      %v366 = vld [vmem:[#allocation10] sm:$0xff]
      %v367 = vld [vmem:[#allocation10 + $0x8] sm:$0xff]
      %v368 = vld [vmem:[%s4] sm:$0x1]
      %v370 = vperm.slane %v368, 0
      %v372 = vadd.f32 %v366, %v370
      %v373 = vadd.f32 %v367, %v370
      %v374 = vld [vmem:[#allocation11] sm:$0xff]
      %v375 = vld [vmem:[#allocation11 + $0x8] sm:$0xff]
      %v376 = vmax.f32 %v374, 1e-30
      %v377 = vmax.f32 %v375, 1e-30
      %v378 = vrsqrt.pop %v376
      %v379 = vmul.f32 %v378, %v376
      %v380 = vmul.f32 %v379, %v378
      %v381 = vmul.f32 0.5, %v380
      %v382 = vsub.f32 1.5, %v381
      %v383 = vmul.f32 %v378, %v382
      %vm384 = vweird.f32 %v376
      %vm385 = vweird.f32 %v378
      %vm386 = vmor %vm384, %vm385
      %v387 = vsel %vm386, %v378, %v383
      %v388 = vrsqrt.pop %v377
      %v389 = vmul.f32 %v388, %v377
      %v390 = vmul.f32 %v389, %v388
      %v391 = vmul.f32 0.5, %v390
      %v392 = vsub.f32 1.5, %v391
      %v393 = vmul.f32 %v388, %v392
      %vm394 = vweird.f32 %v377
      %vm395 = vweird.f32 %v388
      %vm396 = vmor %vm394, %vm395
      %v397 = vsel %vm396, %v388, %v393
      %v398 = vmul.f32 %v376, %v387
      %v399 = vmul.f32 %v377, %v397
      %v400 = vmul.f32 %v372, %v387
      %v401 = vmul.f32 %v373, %v397
      %v402 = vmul.f32 %v400, 0.70710677
      %v403 = vmul.f32 %v401, 0.70710677
      %v404 = vmul.f32 %v402, %v402
      %v405 = vmin.f32 16.0, %v404
      %v406 = vmul.f32 %v405, 2.1237322e-06
      %v407 = vadd.f32 %v406, 0.00028619796
      %v408 = vmul.f32 %v405, %v407
      %v409 = vadd.f32 %v408, 0.0036580483
      %v410 = vmul.f32 %v405, %v409
      %v411 = vadd.f32 %v410, 0.05243302
      %v412 = vmul.f32 %v405, %v411
      %v413 = vadd.f32 %v412, 0.18741608
      %v414 = vmul.f32 %v405, %v413
      %v415 = vadd.f32 %v414, 1.1283791
      %v416 = vmul.f32 %v402, %v415
      %v417 = vmul.f32 %v405, 3.8918573e-05
      %v418 = vadd.f32 %v417, 0.001143296
      %v419 = vmul.f32 %v405, %v418
      %v420 = vadd.f32 %v419, 0.014752088
      %v421 = vmul.f32 %v405, %v420
      %v422 = vadd.f32 %v421, 0.112945676
      %v423 = vmul.f32 %v405, %v422
      %v424 = vadd.f32 %v423, 0.4994258
      %v425 = vmul.f32 %v405, %v424
      %v426 = vadd.f32 %v425, 1.0
      %v427 = vrcp.pop %v426
      %v428 = vmul.f32 %v426, %v427
      %v429 = vsub.f32 1.0, %v428
      %v430 = vmul.f32 %v427, %v429
      %v431 = vadd.f32 %v427, %v430
      %vm432 = vweird.f32 %v426
      %vm433 = vweird.f32 %v427
      %vm434 = vmor %vm432, %vm433
      %v435 = vsel %vm434, %v427, %v431
      %v436 = vand.u32 2147483647, %v426
      %vm437 = vcmp.eq.f32.partialorder %v436, 8.507059e+37
      %v438 = vand.u32 %v426, 2147483648
      %v439 = vor.u32 1.1754944e-38, %v438
      %v440 = vsel %vm437, %v439, %v435
      %v441 = vmul.f32 %v416, %v440
      %v442 = vmin.f32 %v441, 1.0
      %v443 = vmax.f32 %v442, -1.0
      %v444 = vmul.f32 %v403, %v403
      %v445 = vmin.f32 16.0, %v444
      %v446 = vmul.f32 %v445, 2.1237322e-06
      %v447 = vadd.f32 %v446, 0.00028619796
      %v448 = vmul.f32 %v445, %v447
      %v449 = vadd.f32 %v448, 0.0036580483
      %v450 = vmul.f32 %v445, %v449
      %v451 = vadd.f32 %v450, 0.05243302
      %v452 = vmul.f32 %v445, %v451
      %v453 = vadd.f32 %v452, 0.18741608
      %v454 = vmul.f32 %v445, %v453
      %v455 = vadd.f32 %v454, 1.1283791
      %v456 = vmul.f32 %v403, %v455
      %v457 = vmul.f32 %v445, 3.8918573e-05
      %v458 = vadd.f32 %v457, 0.001143296
      %v459 = vmul.f32 %v445, %v458
      %v460 = vadd.f32 %v459, 0.014752088
      %v461 = vmul.f32 %v445, %v460
      %v462 = vadd.f32 %v461, 0.112945676
      %v463 = vmul.f32 %v445, %v462
      %v464 = vadd.f32 %v463, 0.4994258
      %v465 = vmul.f32 %v445, %v464
      %v466 = vadd.f32 %v465, 1.0
      %v467 = vrcp.pop %v466
      %v468 = vmul.f32 %v466, %v467
      %v469 = vsub.f32 1.0, %v468
      %v470 = vmul.f32 %v467, %v469
      %v471 = vadd.f32 %v467, %v470
      %vm472 = vweird.f32 %v466
      %vm473 = vweird.f32 %v467
      %vm474 = vmor %vm472, %vm473
      %v475 = vsel %vm474, %v467, %v471
      %v476 = vand.u32 2147483647, %v466
      %vm477 = vcmp.eq.f32.partialorder %v476, 8.507059e+37
      %v478 = vand.u32 %v466, 2147483648
      %v479 = vor.u32 1.1754944e-38, %v478
      %v480 = vsel %vm477, %v479, %v475
      %v481 = vmul.f32 %v456, %v480
      %v482 = vmin.f32 %v481, 1.0
      %v483 = vmax.f32 %v482, -1.0
      %v484 = vadd.f32 %v443, 1.0
      %v485 = vadd.f32 %v483, 1.0
      %v486 = vmul.f32 %v484, 0.5
      %v487 = vmul.f32 %v485, 0.5
      %v488 = vmul.f32 %v400, -0.5
      %v489 = vmul.f32 %v401, -0.5
      %v490 = vmul.f32 %v488, %v400
      %v491 = vmul.f32 %v489, %v401
      %v492 = vmul.f32 %v490, 1.442695
      %v493 = vpow.pop %v492
      %v494 = vmul.f32 %v491, 1.442695
      %v495 = vpow.pop %v494
      %v496 = vmul.f32 %v493, 0.3989423
      %v497 = vmul.f32 %v495, 0.3989423
      %v498 = vmul.f32 %v372, %v486
      %v499 = vmul.f32 %v373, %v487
      %v500 = vmul.f32 %v398, %v496
      %v501 = vmul.f32 %v399, %v497
      %v502 = vadd.f32 %v498, %v500
      %v503 = vadd.f32 %v499, %v501
      %v504 = vmul.f32 %v376, %v486
      %v505 = vmul.f32 %v377, %v487
      %v506 = vmul.f32 %v372, %v502
      %v507 = vmul.f32 %v373, %v503
      %v508 = vadd.f32 %v504, %v506
      %v509 = vadd.f32 %v505, %v507
      %v510 = vmul.f32 %v502, %v502
      %v511 = vmul.f32 %v503, %v503
      %v512 = vsub.f32 %v508, %v510
      %v513 = vsub.f32 %v509, %v511
      %514 = vst [vmem:[#allocation10] sm:$0xff] %v502
      %515 = vst [vmem:[#allocation10 + $0x8] sm:$0xff] %v503
      %516 = vst [vmem:[#allocation11] sm:$0xff] %v512
      %517 = vst [vmem:[#allocation11 + $0x8] sm:$0xff] %v513
    $region45: #{tpu_custom_call.1} parent=1 // pred_fallthru
      _
    // Predicated region
    $region46: #{tpu_custom_call.1} parent=1 // pred_check
      _
    $region47: #{tpu_custom_call.1} parent=1 // pred_check_branch
      %519 = sbr.rel (0) target = $region49
    $region48: #{tpu_custom_call.1} parent=1 // pred_region
      %521 = vsyncadd [#allocation4], 0
      %s522 = sshll.u32 [#allocation10], 4
      %s523 = int_to_ptr.vmem [resolvable:$true] %s522
      %s524 = sshll.u32 %s5, 4
      %s525 = int_to_ptr.hbm [resolvable:$true] %s524
      %530 = dma.vmem_to_hbm [thread:$0]  %s523, 256, %s525, [#allocation4], 128, 128, 8
    $region49: #{tpu_custom_call.1} parent=1 // pred_fallthru
      _
    // Predicated region
    $region50: #{tpu_custom_call.1} parent=1 // pred_check
      _
    $region51: #{tpu_custom_call.1} parent=1 // pred_check_branch
      %532 = sbr.rel (0) target = $region53
    $region52: #{tpu_custom_call.1} parent=1 // pred_region
      %534 = vsyncadd [#allocation12], 0
      %s535 = sshll.u32 [#allocation11], 4
      %s536 = int_to_ptr.vmem [resolvable:$true] %s535
      %s537 = sshll.u32 %s6, 4
      %s538 = int_to_ptr.hbm [resolvable:$true] %s537
      %543 = dma.vmem_to_hbm [thread:$0]  %s536, 256, %s538, [#allocation12], 128, 128, 8
    $region53: #{tpu_custom_call.1} parent=1 // pred_fallthru
      _
    // Predicated region
    $region54: #{tpu_custom_call.1} parent=1 // pred_check
      _
    $region55: #{tpu_custom_call.1} parent=1 // pred_check_branch
      %545 = sbr.rel (0) target = $region57
    $region56: #{tpu_custom_call.1} parent=1 // pred_region
      %547 = dma.done [#allocation4], 256
    $region57: #{tpu_custom_call.1} parent=1 // pred_fallthru
      _
    // Predicated region
    $region58: #{tpu_custom_call.1} parent=1 // pred_check
      _
    $region59: #{tpu_custom_call.1} parent=1 // pred_check_branch
      %549 = sbr.rel (0) target = $region61
    $region60: #{tpu_custom_call.1} parent=1 // pred_region
      %551 = dma.done [#allocation12], 256
    $region61: #{tpu_custom_call.1} parent=1 // pred_fallthru
      _
    %552 = vsyncpa [#allocation3], 1
    %553 = vsyncpa [#allocation6], 1
    %554 = vsyncpa [#allocation9], 1
    %555 = vsyncpa [#allocation4], 1
    %556 = vsyncpa [#allocation12], 1

</llo_original>
